<compile_context>
chip_gen: v7x
topology: tpu7x:2x2x1
jax: 0.10.0
libtpu: 0.0.40
codegen_flags: <defaults>
</compile_context>

<pallas_src>
import jax
import jax.numpy as jnp
from jax import lax
from jax.experimental import pallas as pl
from jax.experimental.pallas import tpu as pltpu

CIN = 240
COUT = 960


def _relu_conv1x1_kernel(x_ref, w_ref, b_ref, o_ref):
    # x_ref: (M, CIN), w_ref: (COUT, CIN), b_ref: (1, COUT), o_ref: (M, COUT)
    x = jnp.maximum(x_ref[...], 0.0)                       # ReLU (VPU)
    # Contract x's CIN axis with w's CIN axis -> (M, COUT); no transpose needed.
    acc = lax.dot_general(
        x, w_ref[...],
        dimension_numbers=(((1,), (1,)), ((), ())),
        preferred_element_type=jnp.float32)                # 1x1 conv == matmul (MXU)
    o_ref[...] = acc + b_ref[...]                          # bias add (VPU)


def relu_conv1x1(x_nchw, weight, bias):
    """x_nchw: (N, CIN, H, W) with H == W == 1.
    weight: (COUT, CIN, 1, 1). bias: (COUT,). Returns (N, COUT, 1, 1)."""
    n, cin, h, w = x_nchw.shape
    assert cin == CIN and h == 1 and w == 1
    m = n * h * w

    x2d = x_nchw.reshape(m, cin)                           # (M, CIN)
    w2d = weight.reshape(COUT, CIN)                        # (COUT, CIN) -- no .T
    b2d = bias.reshape(1, COUT)                            # (1, COUT)

    cost = pl.CostEstimate(
        flops=2 * m * CIN * COUT,
        bytes_accessed=(m * CIN + COUT * CIN + COUT + m * COUT) * 4,
        transcendentals=0,
    )

    out = pl.pallas_call(
        _relu_conv1x1_kernel,
        out_shape=jax.ShapeDtypeStruct((m, COUT), jnp.float32),
        grid=(1,),
        in_specs=[
            pl.BlockSpec((m, CIN), lambda i: (0, 0)),
            pl.BlockSpec((COUT, CIN), lambda i: (0, 0)),
            pl.BlockSpec((1, COUT), lambda i: (0, 0)),
        ],
        out_specs=pl.BlockSpec((m, COUT), lambda i: (0, 0)),
        compiler_params=pltpu.CompilerParams(
            dimension_semantics=("arbitrary",)),
        cost_estimate=cost,
    )(x2d, w2d, b2d)

    return out.reshape(n, COUT, 1, 1)


if __name__ == "__main__":
    key = jax.random.PRNGKey(0)
    kx, kw, kb = jax.random.split(key, 3)

    # Deterministic synthetic parameters (shapes from Conv2d(240, 960, 1, 1)).
    x = jax.random.normal(kx, (1, CIN, 1, 1), dtype=jnp.float32)
    weight = jax.random.normal(kw, (COUT, CIN, 1, 1), dtype=jnp.float32) * 0.05
    bias = jax.random.normal(kb, (COUT,), dtype=jnp.float32) * 0.05

    y = relu_conv1x1(x, weight, bias)
    jax.block_until_ready(y)

    # Reference check in plain JAX (ReLU -> 1x1 conv).
    ref = (jnp.maximum(x.reshape(1, CIN), 0.0) @ weight.reshape(COUT, CIN).T
           + bias).reshape(1, COUT, 1, 1)
    assert y.shape == (1, COUT, 1, 1)
    assert jnp.allclose(y, ref, atol=1e-4, rtol=1e-4)

    print("KERNEL_OK")
</pallas_src>

<mosaic_0001>
module attributes {stable_mosaic.version = 11 : i64} {
  func.func @_relu_conv1x1_kernel(%arg0: i32, %arg1: memref<1x240xf32, #tpu.memory_space<vmem>>, %arg2: memref<960x240xf32, #tpu.memory_space<vmem>>, %arg3: memref<1x960xf32, #tpu.memory_space<vmem>>, %arg4: memref<1x960xf32, #tpu.memory_space<vmem>>) attributes {dimension_semantics = [#tpu.dimension_semantics<arbitrary>], iteration_bounds = array<i64: 1>, scalar_prefetch = 0 : i64, scratch_operands = 0 : i64, tpu.core_type = #tpu.core_type<tc>, window_params = [{pipeline_mode = #tpu.pipeline_mode<synchronous>, transform_indices = @transform_0, window_bounds = array<i64: 1, 240>}, {pipeline_mode = #tpu.pipeline_mode<synchronous>, transform_indices = @transform_1, window_bounds = array<i64: 960, 240>}, {pipeline_mode = #tpu.pipeline_mode<synchronous>, transform_indices = @transform_2, window_bounds = array<i64: 1, 960>}, {pipeline_mode = #tpu.pipeline_mode<synchronous>, transform_indices = @transform_3, window_bounds = array<i64: 1, 960>}]} {
    %c0 = arith.constant 0 : index
    %c0_0 = arith.constant 0 : index
    %0 = vector.load %arg1[%c0, %c0_0] : memref<1x240xf32, #tpu.memory_space<vmem>>, vector<1x240xf32>
    %cst = arith.constant 0.000000e+00 : f32
    %1 = vector.broadcast %cst : f32 to vector<1x240xf32>
    %2 = arith.maximumf %0, %1 : vector<1x240xf32>
    %c0_1 = arith.constant 0 : index
    %c0_2 = arith.constant 0 : index
    %3 = vector.load %arg2[%c0_1, %c0_2] : memref<960x240xf32, #tpu.memory_space<vmem>>, vector<960x240xf32>
    %cst_3 = arith.constant dense<0.000000e+00> : vector<1x960xf32>
    %4 = tpu.matmul %2, %3, %cst_3 {dimension_numbers = #tpu.dot_dimension_numbers<[1], [1], [0], [0], [0, 0, 1, 0], [], []>} : vector<1x240xf32>, vector<960x240xf32>, vector<1x960xf32> -> vector<1x960xf32>
    %c0_4 = arith.constant 0 : index
    %c0_5 = arith.constant 0 : index
    %5 = vector.load %arg3[%c0_4, %c0_5] : memref<1x960xf32, #tpu.memory_space<vmem>>, vector<1x960xf32>
    %6 = arith.addf %4, %5 : vector<1x960xf32>
    %c0_6 = arith.constant 0 : index
    %c0_7 = arith.constant 0 : index
    %7 = vector.load %arg4[%c0_6, %c0_7] : memref<1x960xf32, #tpu.memory_space<vmem>>, vector<1x960xf32>
    tpu.vector_store %arg4[%c0_6, %c0_7], %6 {strides = array<i32>} : memref<1x960xf32, #tpu.memory_space<vmem>>, vector<1x960xf32>,
    return
  }
  func.func @transform_0(%arg0: i32) -> (i32, i32) {
    %c0_i32 = arith.constant 0 : i32
    %c0_i32_0 = arith.constant 0 : i32
    %c0_i32_1 = arith.constant 0 : i32
    return %c0_i32, %c0_i32_0 : i32, i32
  }
  func.func @transform_1(%arg0: i32) -> (i32, i32) {
    %c0_i32 = arith.constant 0 : i32
    %c0_i32_0 = arith.constant 0 : i32
    %c0_i32_1 = arith.constant 0 : i32
    return %c0_i32, %c0_i32_0 : i32, i32
  }
  func.func @transform_2(%arg0: i32) -> (i32, i32) {
    %c0_i32 = arith.constant 0 : i32
    %c0_i32_0 = arith.constant 0 : i32
    %c0_i32_1 = arith.constant 0 : i32
    return %c0_i32, %c0_i32_0 : i32, i32
  }
  func.func @transform_3(%arg0: i32) -> (i32, i32) {
    %c0_i32 = arith.constant 0 : i32
    %c0_i32_0 = arith.constant 0 : i32
    %c0_i32_1 = arith.constant 0 : i32
    return %c0_i32, %c0_i32_0 : i32, i32
  }
}

</mosaic_0001>

<llo_original>
// kernel: tpu_custom_call.1
$region0: #{tpu_custom_call.1}
  #allocation0 [shape = 'u32[]', space=smem, size = 0x4, offset = 0x4, fixed_abs, tag = 'smem constant byte address 0x4 - core index']
  #allocation1 [shape = 'u32[144,128]{1,0:T(1,128)}', space=vmem, size = 0x12000, scoped, tag = 'internal scratch']
  %s0 = inlined_call_operand.hbm [shape: f32[1,240], index: 0, kind: input, shape index: {}]
  %s1 = inlined_call_operand.hbm [shape: f32[960,240], index: 1, kind: input, shape index: {}]
  %s2 = inlined_call_operand.hbm [shape: f32[1,960], index: 2, kind: input, shape index: {}]
  %s3 = inlined_call_operand.hbm [shape: f32[1,960], index: 3, kind: output, shape index: {}]
  %s4 = sld [smem:[#allocation0]]
  $region34: #{tpu_custom_call.1} parent=0
    _
  %s6 = ssub.s32 1, %s4
  %s7 = scalar_select 0, %s6, %s4
  $region1: #{tpu_custom_call.1} parent=0
    #allocation2 [shape = 'u8[1024]{0}', space=vmem, size = 0x400, scoped, tag = 'input window, operand 0, single buffered']
    #allocation3 [shape = 's32[1]{0}', space=sflag, size = 0x4, scoped, tag = 'scoped memory for tpu_custom_call.1']
    #allocation4 [shape = 's32[1]{0}', space=sflag, size = 0x4, scoped, tag = 'scoped memory for tpu_custom_call.1']
    #allocation5 [shape = 'u8[983040]{0}', space=vmem, size = 0xf0000, scoped, tag = 'input window, operand 1, single buffered']
    #allocation6 [shape = 's32[1]{0}', space=sflag, size = 0x4, scoped, tag = 'scoped memory for tpu_custom_call.1']
    #allocation7 [shape = 'u8[4096]{0}', space=vmem, size = 0x1000, scoped, tag = 'input window, operand 2, single buffered']
    #allocation8 [shape = 'u8[4096]{0}', space=vmem, size = 0x1000, scoped, tag = 'output window, operand 0, single buffered']
    %8 = vsyncpa [#allocation3], 0
    %9 = vsyncpa [#allocation6], 0
    %10 = vsyncpa [#allocation4], 0
    // Predicated region
    $region2: #{tpu_custom_call.1} parent=1 // pred_check
      _
    $region3: #{tpu_custom_call.1} parent=1 // pred_check_branch
      %12 = sbr.rel (0) target = $region5
    $region4: #{tpu_custom_call.1} parent=1 // pred_region
      %s14 = ssub.s32 32, 32
      %15 = vsyncadd [#allocation3], %s14
      %s17 = sshll.u32 [#allocation2], 4
      %s18 = int_to_ptr.vmem [resolvable:$true] %s17
      %20 = dma.hbm_to_vmem [thread:$0]  %s0, 32, %s18, [#allocation3]
    $region5: #{tpu_custom_call.1} parent=1 // pred_fallthru
      _
    // Predicated region
    $region6: #{tpu_custom_call.1} parent=1 // pred_check
      _
    $region7: #{tpu_custom_call.1} parent=1 // pred_check_branch
      %22 = sbr.rel (0) target = $region9
    $region8: #{tpu_custom_call.1} parent=1 // pred_region
      %s24 = ssub.s32 30720, 30720
      %25 = vsyncadd [#allocation6], %s24
      %s26 = sshll.u32 [#allocation5], 4
      %s27 = int_to_ptr.vmem [resolvable:$true] %s26
      %32 = dma.hbm_to_vmem [thread:$0]  %s1, 30720, %s27, [#allocation6], 256, 256, 16
    $region9: #{tpu_custom_call.1} parent=1 // pred_fallthru
      _
    // Predicated region
    $region10: #{tpu_custom_call.1} parent=1 // pred_check
      _
    $region11: #{tpu_custom_call.1} parent=1 // pred_check_branch
      %34 = sbr.rel (0) target = $region13
    $region12: #{tpu_custom_call.1} parent=1 // pred_region
      %s36 = ssub.s32 128, 128
      %37 = vsyncadd [#allocation6], %s36
      %s39 = sshll.u32 [#allocation7], 4
      %s40 = int_to_ptr.vmem [resolvable:$true] %s39
      %42 = dma.hbm_to_vmem [thread:$0]  %s2, 128, %s40, [#allocation6]
    $region13: #{tpu_custom_call.1} parent=1 // pred_fallthru
      _
    // Predicated region
    $region14: #{tpu_custom_call.1} parent=1 // pred_check
      _
    $region15: #{tpu_custom_call.1} parent=1 // pred_check_branch
      %44 = sbr.rel (0) target = $region17
    $region16: #{tpu_custom_call.1} parent=1 // pred_region
      %45 = dma.done [#allocation3], 32
    $region17: #{tpu_custom_call.1} parent=1 // pred_fallthru
      _
    // Predicated region
    $region18: #{tpu_custom_call.1} parent=1 // pred_check
      _
    $region19: #{tpu_custom_call.1} parent=1 // pred_check_branch
      %47 = sbr.rel (0) target = $region21
    $region20: #{tpu_custom_call.1} parent=1 // pred_region
      %48 = dma.done [#allocation6], 30720
    $region21: #{tpu_custom_call.1} parent=1 // pred_fallthru
      _
    // Predicated region
    $region22: #{tpu_custom_call.1} parent=1 // pred_check
      _
    $region23: #{tpu_custom_call.1} parent=1 // pred_check_branch
      %50 = sbr.rel (0) target = $region25
    $region24: #{tpu_custom_call.1} parent=1 // pred_region
      %51 = dma.done [#allocation6], 128
    $region25: #{tpu_custom_call.1} parent=1 // pred_fallthru
      _
    %v52 = vld [vmem:[#allocation2] sm:$0x3]
    %v53 = vmax.f32 %v52, 0.0
    %v54 = vld [vmem:[#allocation5] sm:$0xff]
    %v55 = vld [vmem:[#allocation5 + $0x8] sm:$0xff]
    %v56 = vld [vmem:[#allocation5 + $0x10] sm:$0xff]
    %v57 = vld [vmem:[#allocation5 + $0x18] sm:$0xff]
    %v58 = vld [vmem:[#allocation5 + $0x20] sm:$0xff]
    %v59 = vld [vmem:[#allocation5 + $0x28] sm:$0xff]
    %v60 = vld [vmem:[#allocation5 + $0x30] sm:$0xff]
    %v61 = vld [vmem:[#allocation5 + $0x38] sm:$0xff]
    %v62 = vld [vmem:[#allocation5 + $0x40] sm:$0xff]
    %v63 = vld [vmem:[#allocation5 + $0x48] sm:$0xff]
    %v64 = vld [vmem:[#allocation5 + $0x50] sm:$0xff]
    %v65 = vld [vmem:[#allocation5 + $0x58] sm:$0xff]
    %v66 = vld [vmem:[#allocation5 + $0x60] sm:$0xff]
    %v67 = vld [vmem:[#allocation5 + $0x68] sm:$0xff]
    %v68 = vld [vmem:[#allocation5 + $0x70] sm:$0xff]
    %v69 = vld [vmem:[#allocation5 + $0x78] sm:$0xff]
    %v70 = vld [vmem:[#allocation5 + $0x80] sm:$0xff]
    %v71 = vld [vmem:[#allocation5 + $0x88] sm:$0xff]
    %v72 = vld [vmem:[#allocation5 + $0x90] sm:$0xff]
    %v73 = vld [vmem:[#allocation5 + $0x98] sm:$0xff]
    %v74 = vld [vmem:[#allocation5 + $0xa0] sm:$0xff]
    %v75 = vld [vmem:[#allocation5 + $0xa8] sm:$0xff]
    %v76 = vld [vmem:[#allocation5 + $0xb0] sm:$0xff]
    %v77 = vld [vmem:[#allocation5 + $0xb8] sm:$0xff]
    %v78 = vld [vmem:[#allocation5 + $0xc0] sm:$0xff]
    %v79 = vld [vmem:[#allocation5 + $0xc8] sm:$0xff]
    %v80 = vld [vmem:[#allocation5 + $0xd0] sm:$0xff]
    %v81 = vld [vmem:[#allocation5 + $0xd8] sm:$0xff]
    %v82 = vld [vmem:[#allocation5 + $0xe0] sm:$0xff]
    %v83 = vld [vmem:[#allocation5 + $0xe8] sm:$0xff]
    %v84 = vld [vmem:[#allocation5 + $0xf0] sm:$0xff]
    %v85 = vld [vmem:[#allocation5 + $0xf8] sm:$0xff]
    %v86 = vld [vmem:[#allocation5 + $0x100] sm:$0xff]
    %v87 = vld [vmem:[#allocation5 + $0x108] sm:$0xff]
    %v88 = vld [vmem:[#allocation5 + $0x110] sm:$0xff]
    %v89 = vld [vmem:[#allocation5 + $0x118] sm:$0xff]
    %v90 = vld [vmem:[#allocation5 + $0x120] sm:$0xff]
    %v91 = vld [vmem:[#allocation5 + $0x128] sm:$0xff]
    %v92 = vld [vmem:[#allocation5 + $0x130] sm:$0xff]
    %v93 = vld [vmem:[#allocation5 + $0x138] sm:$0xff]
    %v94 = vld [vmem:[#allocation5 + $0x140] sm:$0xff]
    %v95 = vld [vmem:[#allocation5 + $0x148] sm:$0xff]
    %v96 = vld [vmem:[#allocation5 + $0x150] sm:$0xff]
    %v97 = vld [vmem:[#allocation5 + $0x158] sm:$0xff]
    %v98 = vld [vmem:[#allocation5 + $0x160] sm:$0xff]
    %v99 = vld [vmem:[#allocation5 + $0x168] sm:$0xff]
    %v100 = vld [vmem:[#allocation5 + $0x170] sm:$0xff]
    %v101 = vld [vmem:[#allocation5 + $0x178] sm:$0xff]
    %v102 = vld [vmem:[#allocation5 + $0x180] sm:$0xff]
    %v103 = vld [vmem:[#allocation5 + $0x188] sm:$0xff]
    %v104 = vld [vmem:[#allocation5 + $0x190] sm:$0xff]
    %v105 = vld [vmem:[#allocation5 + $0x198] sm:$0xff]
    %v106 = vld [vmem:[#allocation5 + $0x1a0] sm:$0xff]
    %v107 = vld [vmem:[#allocation5 + $0x1a8] sm:$0xff]
    %v108 = vld [vmem:[#allocation5 + $0x1b0] sm:$0xff]
    %v109 = vld [vmem:[#allocation5 + $0x1b8] sm:$0xff]
    %v110 = vld [vmem:[#allocation5 + $0x1c0] sm:$0xff]
    %v111 = vld [vmem:[#allocation5 + $0x1c8] sm:$0xff]
    %v112 = vld [vmem:[#allocation5 + $0x1d0] sm:$0xff]
    %v113 = vld [vmem:[#allocation5 + $0x1d8] sm:$0xff]
    %v114 = vld [vmem:[#allocation5 + $0x1e0] sm:$0xff]
    %v115 = vld [vmem:[#allocation5 + $0x1e8] sm:$0xff]
    %v116 = vld [vmem:[#allocation5 + $0x1f0] sm:$0xff]
    %v117 = vld [vmem:[#allocation5 + $0x1f8] sm:$0xff]
    %v118 = vld [vmem:[#allocation5 + $0x200] sm:$0xff]
    %v119 = vld [vmem:[#allocation5 + $0x208] sm:$0xff]
    %v120 = vld [vmem:[#allocation5 + $0x210] sm:$0xff]
    %v121 = vld [vmem:[#allocation5 + $0x218] sm:$0xff]
    %v122 = vld [vmem:[#allocation5 + $0x220] sm:$0xff]
    %v123 = vld [vmem:[#allocation5 + $0x228] sm:$0xff]
    %v124 = vld [vmem:[#allocation5 + $0x230] sm:$0xff]
    %v125 = vld [vmem:[#allocation5 + $0x238] sm:$0xff]
    %v126 = vld [vmem:[#allocation5 + $0x240] sm:$0xff]
    %v127 = vld [vmem:[#allocation5 + $0x248] sm:$0xff]
    %v128 = vld [vmem:[#allocation5 + $0x250] sm:$0xff]
    %v129 = vld [vmem:[#allocation5 + $0x258] sm:$0xff]
    %v130 = vld [vmem:[#allocation5 + $0x260] sm:$0xff]
    %v131 = vld [vmem:[#allocation5 + $0x268] sm:$0xff]
    %v132 = vld [vmem:[#allocation5 + $0x270] sm:$0xff]
    %v133 = vld [vmem:[#allocation5 + $0x278] sm:$0xff]
    %v134 = vld [vmem:[#allocation5 + $0x280] sm:$0xff]
    %v135 = vld [vmem:[#allocation5 + $0x288] sm:$0xff]
    %v136 = vld [vmem:[#allocation5 + $0x290] sm:$0xff]
    %v137 = vld [vmem:[#allocation5 + $0x298] sm:$0xff]
    %v138 = vld [vmem:[#allocation5 + $0x2a0] sm:$0xff]
    %v139 = vld [vmem:[#allocation5 + $0x2a8] sm:$0xff]
    %v140 = vld [vmem:[#allocation5 + $0x2b0] sm:$0xff]
    %v141 = vld [vmem:[#allocation5 + $0x2b8] sm:$0xff]
    %v142 = vld [vmem:[#allocation5 + $0x2c0] sm:$0xff]
    %v143 = vld [vmem:[#allocation5 + $0x2c8] sm:$0xff]
    %v144 = vld [vmem:[#allocation5 + $0x2d0] sm:$0xff]
    %v145 = vld [vmem:[#allocation5 + $0x2d8] sm:$0xff]
    %v146 = vld [vmem:[#allocation5 + $0x2e0] sm:$0xff]
    %v147 = vld [vmem:[#allocation5 + $0x2e8] sm:$0xff]
    %v148 = vld [vmem:[#allocation5 + $0x2f0] sm:$0xff]
    %v149 = vld [vmem:[#allocation5 + $0x2f8] sm:$0xff]
    %v150 = vld [vmem:[#allocation5 + $0x300] sm:$0xff]
    %v151 = vld [vmem:[#allocation5 + $0x308] sm:$0xff]
    %v152 = vld [vmem:[#allocation5 + $0x310] sm:$0xff]
    %v153 = vld [vmem:[#allocation5 + $0x318] sm:$0xff]
    %v154 = vld [vmem:[#allocation5 + $0x320] sm:$0xff]
    %v155 = vld [vmem:[#allocation5 + $0x328] sm:$0xff]
    %v156 = vld [vmem:[#allocation5 + $0x330] sm:$0xff]
    %v157 = vld [vmem:[#allocation5 + $0x338] sm:$0xff]
    %v158 = vld [vmem:[#allocation5 + $0x340] sm:$0xff]
    %v159 = vld [vmem:[#allocation5 + $0x348] sm:$0xff]
    %v160 = vld [vmem:[#allocation5 + $0x350] sm:$0xff]
    %v161 = vld [vmem:[#allocation5 + $0x358] sm:$0xff]
    %v162 = vld [vmem:[#allocation5 + $0x360] sm:$0xff]
    %v163 = vld [vmem:[#allocation5 + $0x368] sm:$0xff]
    %v164 = vld [vmem:[#allocation5 + $0x370] sm:$0xff]
    %v165 = vld [vmem:[#allocation5 + $0x378] sm:$0xff]
    %v166 = vld [vmem:[#allocation5 + $0x380] sm:$0xff]
    %v167 = vld [vmem:[#allocation5 + $0x388] sm:$0xff]
    %v168 = vld [vmem:[#allocation5 + $0x390] sm:$0xff]
    %v169 = vld [vmem:[#allocation5 + $0x398] sm:$0xff]
    %v170 = vld [vmem:[#allocation5 + $0x3a0] sm:$0xff]
    %v171 = vld [vmem:[#allocation5 + $0x3a8] sm:$0xff]
    %v172 = vld [vmem:[#allocation5 + $0x3b0] sm:$0xff]
    %v173 = vld [vmem:[#allocation5 + $0x3b8] sm:$0xff]
    %v174 = vld [vmem:[#allocation5 + $0x3c0] sm:$0xff]
    %v175 = vld [vmem:[#allocation5 + $0x3c8] sm:$0xff]
    %v176 = vld [vmem:[#allocation5 + $0x3d0] sm:$0xff]
    %v177 = vld [vmem:[#allocation5 + $0x3d8] sm:$0xff]
    %v178 = vld [vmem:[#allocation5 + $0x3e0] sm:$0xff]
    %v179 = vld [vmem:[#allocation5 + $0x3e8] sm:$0xff]
    %v180 = vld [vmem:[#allocation5 + $0x3f0] sm:$0xff]
    %v181 = vld [vmem:[#allocation5 + $0x3f8] sm:$0xff]
    %v182 = vld [vmem:[#allocation5 + $0x400] sm:$0xff]
    %v183 = vld [vmem:[#allocation5 + $0x408] sm:$0xff]
    %v184 = vld [vmem:[#allocation5 + $0x410] sm:$0xff]
    %v185 = vld [vmem:[#allocation5 + $0x418] sm:$0xff]
    %v186 = vld [vmem:[#allocation5 + $0x420] sm:$0xff]
    %v187 = vld [vmem:[#allocation5 + $0x428] sm:$0xff]
    %v188 = vld [vmem:[#allocation5 + $0x430] sm:$0xff]
    %v189 = vld [vmem:[#allocation5 + $0x438] sm:$0xff]
    %v190 = vld [vmem:[#allocation5 + $0x440] sm:$0xff]
    %v191 = vld [vmem:[#allocation5 + $0x448] sm:$0xff]
    %v192 = vld [vmem:[#allocation5 + $0x450] sm:$0xff]
    %v193 = vld [vmem:[#allocation5 + $0x458] sm:$0xff]
    %v194 = vld [vmem:[#allocation5 + $0x460] sm:$0xff]
    %v195 = vld [vmem:[#allocation5 + $0x468] sm:$0xff]
    %v196 = vld [vmem:[#allocation5 + $0x470] sm:$0xff]
    %v197 = vld [vmem:[#allocation5 + $0x478] sm:$0xff]
    %v198 = vld [vmem:[#allocation5 + $0x480] sm:$0xff]
    %v199 = vld [vmem:[#allocation5 + $0x488] sm:$0xff]
    %v200 = vld [vmem:[#allocation5 + $0x490] sm:$0xff]
    %v201 = vld [vmem:[#allocation5 + $0x498] sm:$0xff]
    %v202 = vld [vmem:[#allocation5 + $0x4a0] sm:$0xff]
    %v203 = vld [vmem:[#allocation5 + $0x4a8] sm:$0xff]
    %v204 = vld [vmem:[#allocation5 + $0x4b0] sm:$0xff]
    %v205 = vld [vmem:[#allocation5 + $0x4b8] sm:$0xff]
    %v206 = vld [vmem:[#allocation5 + $0x4c0] sm:$0xff]
    %v207 = vld [vmem:[#allocation5 + $0x4c8] sm:$0xff]
    %v208 = vld [vmem:[#allocation5 + $0x4d0] sm:$0xff]
    %v209 = vld [vmem:[#allocation5 + $0x4d8] sm:$0xff]
    %v210 = vld [vmem:[#allocation5 + $0x4e0] sm:$0xff]
    %v211 = vld [vmem:[#allocation5 + $0x4e8] sm:$0xff]
    %v212 = vld [vmem:[#allocation5 + $0x4f0] sm:$0xff]
    %v213 = vld [vmem:[#allocation5 + $0x4f8] sm:$0xff]
    %v214 = vld [vmem:[#allocation5 + $0x500] sm:$0xff]
    %v215 = vld [vmem:[#allocation5 + $0x508] sm:$0xff]
    %v216 = vld [vmem:[#allocation5 + $0x510] sm:$0xff]
    %v217 = vld [vmem:[#allocation5 + $0x518] sm:$0xff]
    %v218 = vld [vmem:[#allocation5 + $0x520] sm:$0xff]
    %v219 = vld [vmem:[#allocation5 + $0x528] sm:$0xff]
    %v220 = vld [vmem:[#allocation5 + $0x530] sm:$0xff]
    %v221 = vld [vmem:[#allocation5 + $0x538] sm:$0xff]
    %v222 = vld [vmem:[#allocation5 + $0x540] sm:$0xff]
    %v223 = vld [vmem:[#allocation5 + $0x548] sm:$0xff]
    %v224 = vld [vmem:[#allocation5 + $0x550] sm:$0xff]
    %v225 = vld [vmem:[#allocation5 + $0x558] sm:$0xff]
    %v226 = vld [vmem:[#allocation5 + $0x560] sm:$0xff]
    %v227 = vld [vmem:[#allocation5 + $0x568] sm:$0xff]
    %v228 = vld [vmem:[#allocation5 + $0x570] sm:$0xff]
    %v229 = vld [vmem:[#allocation5 + $0x578] sm:$0xff]
    %v230 = vld [vmem:[#allocation5 + $0x580] sm:$0xff]
    %v231 = vld [vmem:[#allocation5 + $0x588] sm:$0xff]
    %v232 = vld [vmem:[#allocation5 + $0x590] sm:$0xff]
    %v233 = vld [vmem:[#allocation5 + $0x598] sm:$0xff]
    %v234 = vld [vmem:[#allocation5 + $0x5a0] sm:$0xff]
    %v235 = vld [vmem:[#allocation5 + $0x5a8] sm:$0xff]
    %v236 = vld [vmem:[#allocation5 + $0x5b0] sm:$0xff]
    %v237 = vld [vmem:[#allocation5 + $0x5b8] sm:$0xff]
    %v238 = vld [vmem:[#allocation5 + $0x5c0] sm:$0xff]
    %v239 = vld [vmem:[#allocation5 + $0x5c8] sm:$0xff]
    %v240 = vld [vmem:[#allocation5 + $0x5d0] sm:$0xff]
    %v241 = vld [vmem:[#allocation5 + $0x5d8] sm:$0xff]
    %v242 = vld [vmem:[#allocation5 + $0x5e0] sm:$0xff]
    %v243 = vld [vmem:[#allocation5 + $0x5e8] sm:$0xff]
    %v244 = vld [vmem:[#allocation5 + $0x5f0] sm:$0xff]
    %v245 = vld [vmem:[#allocation5 + $0x5f8] sm:$0xff]
    %v246 = vld [vmem:[#allocation5 + $0x600] sm:$0xff]
    %v247 = vld [vmem:[#allocation5 + $0x608] sm:$0xff]
    %v248 = vld [vmem:[#allocation5 + $0x610] sm:$0xff]
    %v249 = vld [vmem:[#allocation5 + $0x618] sm:$0xff]
    %v250 = vld [vmem:[#allocation5 + $0x620] sm:$0xff]
    %v251 = vld [vmem:[#allocation5 + $0x628] sm:$0xff]
    %v252 = vld [vmem:[#allocation5 + $0x630] sm:$0xff]
    %v253 = vld [vmem:[#allocation5 + $0x638] sm:$0xff]
    %v254 = vld [vmem:[#allocation5 + $0x640] sm:$0xff]
    %v255 = vld [vmem:[#allocation5 + $0x648] sm:$0xff]
    %v256 = vld [vmem:[#allocation5 + $0x650] sm:$0xff]
    %v257 = vld [vmem:[#allocation5 + $0x658] sm:$0xff]
    %v258 = vld [vmem:[#allocation5 + $0x660] sm:$0xff]
    %v259 = vld [vmem:[#allocation5 + $0x668] sm:$0xff]
    %v260 = vld [vmem:[#allocation5 + $0x670] sm:$0xff]
    %v261 = vld [vmem:[#allocation5 + $0x678] sm:$0xff]
    %v262 = vld [vmem:[#allocation5 + $0x680] sm:$0xff]
    %v263 = vld [vmem:[#allocation5 + $0x688] sm:$0xff]
    %v264 = vld [vmem:[#allocation5 + $0x690] sm:$0xff]
    %v265 = vld [vmem:[#allocation5 + $0x698] sm:$0xff]
    %v266 = vld [vmem:[#allocation5 + $0x6a0] sm:$0xff]
    %v267 = vld [vmem:[#allocation5 + $0x6a8] sm:$0xff]
    %v268 = vld [vmem:[#allocation5 + $0x6b0] sm:$0xff]
    %v269 = vld [vmem:[#allocation5 + $0x6b8] sm:$0xff]
    %v270 = vld [vmem:[#allocation5 + $0x6c0] sm:$0xff]
    %v271 = vld [vmem:[#allocation5 + $0x6c8] sm:$0xff]
    %v272 = vld [vmem:[#allocation5 + $0x6d0] sm:$0xff]
    %v273 = vld [vmem:[#allocation5 + $0x6d8] sm:$0xff]
    %v274 = vld [vmem:[#allocation5 + $0x6e0] sm:$0xff]
    %v275 = vld [vmem:[#allocation5 + $0x6e8] sm:$0xff]
    %v276 = vld [vmem:[#allocation5 + $0x6f0] sm:$0xff]
    %v277 = vld [vmem:[#allocation5 + $0x6f8] sm:$0xff]
    %v278 = vld [vmem:[#allocation5 + $0x700] sm:$0xff]
    %v279 = vld [vmem:[#allocation5 + $0x708] sm:$0xff]
    %v280 = vld [vmem:[#allocation5 + $0x710] sm:$0xff]
    %v281 = vld [vmem:[#allocation5 + $0x718] sm:$0xff]
    %v282 = vld [vmem:[#allocation5 + $0x720] sm:$0xff]
    %v283 = vld [vmem:[#allocation5 + $0x728] sm:$0xff]
    %v284 = vld [vmem:[#allocation5 + $0x730] sm:$0xff]
    %v285 = vld [vmem:[#allocation5 + $0x738] sm:$0xff]
    %v286 = vld [vmem:[#allocation5 + $0x740] sm:$0xff]
    %v287 = vld [vmem:[#allocation5 + $0x748] sm:$0xff]
    %v288 = vld [vmem:[#allocation5 + $0x750] sm:$0xff]
    %v289 = vld [vmem:[#allocation5 + $0x758] sm:$0xff]
    %v290 = vld [vmem:[#allocation5 + $0x760] sm:$0xff]
    %v291 = vld [vmem:[#allocation5 + $0x768] sm:$0xff]
    %v292 = vld [vmem:[#allocation5 + $0x770] sm:$0xff]
    %v293 = vld [vmem:[#allocation5 + $0x778] sm:$0xff]
    %v294 = vld [vmem:[#allocation7] sm:$0xff]
    %v296 = vlaneseq
    %v297 = vshrl.u32 %v296, 7
    %v298 = vsub.s32 0, %v297
    %v299 = vrot.slane %v53, %v298
    %v300 = vlaneseq
    %v301 = vshrl.u32 %v300, 7
    %v302 = vsub.s32 1, %v301
    %v303 = vrot.slane %v53, %v302
    %v306 = vlaneseq
    %v307 = vshrl.u32 %v306, 7
    %v308 = vsub.s32 0, %v307
    %v309 = vrot.slane %v294, %v308
    %v310 = vlaneseq
    %v311 = vshrl.u32 %v310, 7
    %v312 = vsub.s32 1, %v311
    %v313 = vrot.slane %v294, %v312
    %v314 = vlaneseq
    %v315 = vshrl.u32 %v314, 7
    %v316 = vsub.s32 2, %v315
    %v317 = vrot.slane %v294, %v316
    %v318 = vlaneseq
    %v319 = vshrl.u32 %v318, 7
    %v320 = vsub.s32 3, %v319
    %v321 = vrot.slane %v294, %v320
    %v322 = vlaneseq
    %v323 = vshrl.u32 %v322, 7
    %v324 = vsub.s32 4, %v323
    %v325 = vrot.slane %v294, %v324
    %v326 = vlaneseq
    %v327 = vshrl.u32 %v326, 7
    %v328 = vsub.s32 5, %v327
    %v329 = vrot.slane %v294, %v328
    %v330 = vlaneseq
    %v331 = vshrl.u32 %v330, 7
    %v332 = vsub.s32 6, %v331
    %v333 = vrot.slane %v294, %v332
    %v334 = vlaneseq
    %v335 = vshrl.u32 %v334, 7
    %v336 = vsub.s32 7, %v335
    %v337 = vrot.slane %v294, %v336
    %vm346 = vcmask 916480
    %v347 = vsel %vm346, %v303, 0
    %v350 = vsel %vm346, %v55, 0
    %v353 = vsel %vm346, %v57, 0
    %v356 = vsel %vm346, %v59, 0
    %v359 = vsel %vm346, %v61, 0
    %v362 = vsel %vm346, %v63, 0
    %v365 = vsel %vm346, %v65, 0
    %v368 = vsel %vm346, %v67, 0
    %v371 = vsel %vm346, %v69, 0
    %v374 = vsel %vm346, %v71, 0
    %v377 = vsel %vm346, %v73, 0
    %v380 = vsel %vm346, %v75, 0
    %v383 = vsel %vm346, %v77, 0
    %v386 = vsel %vm346, %v79, 0
    %v389 = vsel %vm346, %v81, 0
    %v392 = vsel %vm346, %v83, 0
    %v395 = vsel %vm346, %v85, 0
    %v398 = vsel %vm346, %v87, 0
    %v401 = vsel %vm346, %v89, 0
    %v404 = vsel %vm346, %v91, 0
    %v407 = vsel %vm346, %v93, 0
    %v410 = vsel %vm346, %v95, 0
    %v413 = vsel %vm346, %v97, 0
    %v416 = vsel %vm346, %v99, 0
    %v419 = vsel %vm346, %v101, 0
    %v422 = vsel %vm346, %v103, 0
    %v425 = vsel %vm346, %v105, 0
    %v428 = vsel %vm346, %v107, 0
    %v431 = vsel %vm346, %v109, 0
    %v434 = vsel %vm346, %v111, 0
    %v437 = vsel %vm346, %v113, 0
    %v440 = vsel %vm346, %v115, 0
    %v443 = vsel %vm346, %v117, 0
    %v446 = vsel %vm346, %v119, 0
    %v449 = vsel %vm346, %v121, 0
    %v452 = vsel %vm346, %v123, 0
    %v455 = vsel %vm346, %v125, 0
    %v458 = vsel %vm346, %v127, 0
    %v461 = vsel %vm346, %v129, 0
    %v464 = vsel %vm346, %v131, 0
    %v467 = vsel %vm346, %v133, 0
    %v470 = vsel %vm346, %v135, 0
    %v473 = vsel %vm346, %v137, 0
    %v476 = vsel %vm346, %v139, 0
    %v479 = vsel %vm346, %v141, 0
    %v482 = vsel %vm346, %v143, 0
    %v485 = vsel %vm346, %v145, 0
    %v488 = vsel %vm346, %v147, 0
    %v491 = vsel %vm346, %v149, 0
    %v494 = vsel %vm346, %v151, 0
    %v497 = vsel %vm346, %v153, 0
    %v500 = vsel %vm346, %v155, 0
    %v503 = vsel %vm346, %v157, 0
    %v506 = vsel %vm346, %v159, 0
    %v509 = vsel %vm346, %v161, 0
    %v512 = vsel %vm346, %v163, 0
    %v515 = vsel %vm346, %v165, 0
    %v518 = vsel %vm346, %v167, 0
    %v521 = vsel %vm346, %v169, 0
    %v524 = vsel %vm346, %v171, 0
    %v527 = vsel %vm346, %v173, 0
    %v530 = vsel %vm346, %v175, 0
    %v533 = vsel %vm346, %v177, 0
    %v536 = vsel %vm346, %v179, 0
    %v539 = vsel %vm346, %v181, 0
    %v542 = vsel %vm346, %v183, 0
    %v545 = vsel %vm346, %v185, 0
    %v548 = vsel %vm346, %v187, 0
    %v551 = vsel %vm346, %v189, 0
    %v554 = vsel %vm346, %v191, 0
    %v557 = vsel %vm346, %v193, 0
    %v560 = vsel %vm346, %v195, 0
    %v563 = vsel %vm346, %v197, 0
    %v566 = vsel %vm346, %v199, 0
    %v569 = vsel %vm346, %v201, 0
    %v572 = vsel %vm346, %v203, 0
    %v575 = vsel %vm346, %v205, 0
    %v578 = vsel %vm346, %v207, 0
    %v581 = vsel %vm346, %v209, 0
    %v584 = vsel %vm346, %v211, 0
    %v587 = vsel %vm346, %v213, 0
    %v590 = vsel %vm346, %v215, 0
    %v593 = vsel %vm346, %v217, 0
    %v596 = vsel %vm346, %v219, 0
    %v599 = vsel %vm346, %v221, 0
    %v602 = vsel %vm346, %v223, 0
    %v605 = vsel %vm346, %v225, 0
    %v608 = vsel %vm346, %v227, 0
    %v611 = vsel %vm346, %v229, 0
    %v614 = vsel %vm346, %v231, 0
    %v617 = vsel %vm346, %v233, 0
    %v620 = vsel %vm346, %v235, 0
    %v623 = vsel %vm346, %v237, 0
    %v626 = vsel %vm346, %v239, 0
    %v629 = vsel %vm346, %v241, 0
    %v632 = vsel %vm346, %v243, 0
    %v635 = vsel %vm346, %v245, 0
    %v638 = vsel %vm346, %v247, 0
    %v641 = vsel %vm346, %v249, 0
    %v644 = vsel %vm346, %v251, 0
    %v647 = vsel %vm346, %v253, 0
    %v650 = vsel %vm346, %v255, 0
    %v653 = vsel %vm346, %v257, 0
    %v656 = vsel %vm346, %v259, 0
    %v659 = vsel %vm346, %v261, 0
    %v662 = vsel %vm346, %v263, 0
    %v665 = vsel %vm346, %v265, 0
    %v668 = vsel %vm346, %v267, 0
    %v671 = vsel %vm346, %v269, 0
    %v674 = vsel %vm346, %v271, 0
    %v677 = vsel %vm346, %v273, 0
    %v680 = vsel %vm346, %v275, 0
    %v683 = vsel %vm346, %v277, 0
    %v686 = vsel %vm346, %v279, 0
    %v689 = vsel %vm346, %v281, 0
    %v692 = vsel %vm346, %v283, 0
    %v695 = vsel %vm346, %v285, 0
    %v698 = vsel %vm346, %v287, 0
    %v701 = vsel %vm346, %v289, 0
    %v704 = vsel %vm346, %v291, 0
    %v707 = vsel %vm346, %v293, 0
    %709 = vmatprep.subr.mxu0 %v350
    %710 = vmatpush1.xpose.msra.mxu0 %v54
    %711 = vmatprep.subr.mxu0 %v353
    %712 = vmatpush1.xpose.msra.mxu0 %v56
    %713 = vmatprep.subr.mxu0 %v356
    %714 = vmatpush1.xpose.msra.mxu0 %v58
    %715 = vmatprep.subr.mxu0 %v359
    %716 = vmatpush1.xpose.msra.mxu0 %v60
    %717 = vmatprep.subr.mxu0 %v362
    %718 = vmatpush1.xpose.msra.mxu0 %v62
    %719 = vmatprep.subr.mxu0 %v365
    %720 = vmatpush1.xpose.msra.mxu0 %v64
    %721 = vmatprep.subr.mxu0 %v368
    %722 = vmatpush1.xpose.msra.mxu0 %v66
    %723 = vmatprep.subr.mxu0 %v371
    %724 = vmatpush1.xpose.msra.mxu0 %v68
    %725 = vmatprep.subr.mxu0 %v374
    %726 = vmatpush1.xpose.msra.mxu0 %v70
    %727 = vmatprep.subr.mxu0 %v377
    %728 = vmatpush1.xpose.msra.mxu0 %v72
    %729 = vmatprep.subr.mxu0 %v380
    %730 = vmatpush1.xpose.msra.mxu0 %v74
    %731 = vmatprep.subr.mxu0 %v383
    %732 = vmatpush1.xpose.msra.mxu0 %v76
    %733 = vmatprep.subr.mxu0 %v386
    %734 = vmatpush1.xpose.msra.mxu0 %v78
    %735 = vmatprep.subr.mxu0 %v389
    %736 = vmatpush1.xpose.msra.mxu0 %v80
    %737 = vmatprep.subr.mxu0 %v392
    %738 = vmatpush1.xpose.msra.mxu0 %v82
    %739 = vmatprep.subr.mxu0 %v395
    %740 = vmatpush1.xpose.msra.mxu0 %v84
    %741 = vmatprep.subr.mxu0 %v398
    %742 = vmatpush1.xpose.msra.mxu0 %v86
    %743 = vmatprep.subr.mxu0 %v401
    %744 = vmatpush1.xpose.msra.mxu0 %v88
    %745 = vmatprep.subr.mxu0 %v404
    %746 = vmatpush1.xpose.msra.mxu0 %v90
    %747 = vmatprep.subr.mxu0 %v407
    %748 = vmatpush1.xpose.msra.mxu0 %v92
    %749 = vmatprep.subr.mxu0 %v410
    %750 = vmatpush1.xpose.msra.mxu0 %v94
    %751 = vmatprep.subr.mxu0 %v413
    %752 = vmatpush1.xpose.msra.mxu0 %v96
    %753 = vmatprep.subr.mxu0 %v416
    %754 = vmatpush1.xpose.msra.mxu0 %v98
    %755 = vmatprep.subr.mxu0 %v419
    %756 = vmatpush1.xpose.msra.mxu0 %v100
    %757 = vmatprep.subr.mxu0 %v422
    %758 = vmatpush1.xpose.msra.mxu0 %v102
    %759 = vmatprep.subr.mxu0 %v425
    %760 = vmatpush1.xpose.msra.mxu0 %v104
    %761 = vmatprep.subr.mxu0 %v428
    %762 = vmatpush1.xpose.msra.mxu0 %v106
    %763 = vmatprep.subr.mxu0 %v431
    %764 = vmatpush1.xpose.msra.mxu0 %v108
    %765 = vmatprep.subr.mxu0 %v434
    %766 = vmatpush1.xpose.msra.mxu0 %v110
    %767 = vmatprep.subr.mxu0 %v437
    %768 = vmatpush1.xpose.msra.mxu0 %v112
    %769 = vmatprep.subr.mxu0 %v440
    %770 = vmatpush1.xpose.msra.mxu0 %v114
    %771 = vmatprep.subr.mxu0 %v443
    %772 = vmatpush1.xpose.msra.mxu0 %v116
    %773 = vmatprep.mubr.f32.mxu0 %v347
    %774 = vmatmul.mubr.f32.gmra.mrb[0].mxu0 %v299
    %v775 = vpop.f32.mrb[0].mxu0
    %v776 = vadd.f32 %v309, %v775
    %v777 = vpop.f32.mrb[0].mxu0
    %v778 = vadd.f32 %v313, %v777
    %779 = vdwg.mxu0
    %780 = vmatprep.subr.mxu0 %v446
    %781 = vmatpush1.xpose.msra.mxu0 %v118
    %782 = vmatprep.subr.mxu0 %v449
    %783 = vmatpush1.xpose.msra.mxu0 %v120
    %784 = vmatprep.subr.mxu0 %v452
    %785 = vmatpush1.xpose.msra.mxu0 %v122
    %786 = vmatprep.subr.mxu0 %v455
    %787 = vmatpush1.xpose.msra.mxu0 %v124
    %788 = vmatprep.subr.mxu0 %v458
    %789 = vmatpush1.xpose.msra.mxu0 %v126
    %790 = vmatprep.subr.mxu0 %v461
    %791 = vmatpush1.xpose.msra.mxu0 %v128
    %792 = vmatprep.subr.mxu0 %v464
    %793 = vmatpush1.xpose.msra.mxu0 %v130
    %794 = vmatprep.subr.mxu0 %v467
    %795 = vmatpush1.xpose.msra.mxu0 %v132
    %796 = vmatprep.subr.mxu0 %v470
    %797 = vmatpush1.xpose.msra.mxu0 %v134
    %798 = vmatprep.subr.mxu0 %v473
    %799 = vmatpush1.xpose.msra.mxu0 %v136
    %800 = vmatprep.subr.mxu0 %v476
    %801 = vmatpush1.xpose.msra.mxu0 %v138
    %802 = vmatprep.subr.mxu0 %v479
    %803 = vmatpush1.xpose.msra.mxu0 %v140
    %804 = vmatprep.subr.mxu0 %v482
    %805 = vmatpush1.xpose.msra.mxu0 %v142
    %806 = vmatprep.subr.mxu0 %v485
    %807 = vmatpush1.xpose.msra.mxu0 %v144
    %808 = vmatprep.subr.mxu0 %v488
    %809 = vmatpush1.xpose.msra.mxu0 %v146
    %810 = vmatprep.subr.mxu0 %v491
    %811 = vmatpush1.xpose.msra.mxu0 %v148
    %812 = vmatprep.subr.mxu0 %v494
    %813 = vmatpush1.xpose.msra.mxu0 %v150
    %814 = vmatprep.subr.mxu0 %v497
    %815 = vmatpush1.xpose.msra.mxu0 %v152
    %816 = vmatprep.subr.mxu0 %v500
    %817 = vmatpush1.xpose.msra.mxu0 %v154
    %818 = vmatprep.subr.mxu0 %v503
    %819 = vmatpush1.xpose.msra.mxu0 %v156
    %820 = vmatprep.subr.mxu0 %v506
    %821 = vmatpush1.xpose.msra.mxu0 %v158
    %822 = vmatprep.subr.mxu0 %v509
    %823 = vmatpush1.xpose.msra.mxu0 %v160
    %824 = vmatprep.subr.mxu0 %v512
    %825 = vmatpush1.xpose.msra.mxu0 %v162
    %826 = vmatprep.subr.mxu0 %v515
    %827 = vmatpush1.xpose.msra.mxu0 %v164
    %828 = vmatprep.subr.mxu0 %v518
    %829 = vmatpush1.xpose.msra.mxu0 %v166
    %830 = vmatprep.subr.mxu0 %v521
    %831 = vmatpush1.xpose.msra.mxu0 %v168
    %832 = vmatprep.subr.mxu0 %v524
    %833 = vmatpush1.xpose.msra.mxu0 %v170
    %834 = vmatprep.subr.mxu0 %v527
    %835 = vmatpush1.xpose.msra.mxu0 %v172
    %836 = vmatprep.subr.mxu0 %v530
    %837 = vmatpush1.xpose.msra.mxu0 %v174
    %838 = vmatprep.subr.mxu0 %v533
    %839 = vmatpush1.xpose.msra.mxu0 %v176
    %840 = vmatprep.subr.mxu0 %v536
    %841 = vmatpush1.xpose.msra.mxu0 %v178
    %842 = vmatprep.subr.mxu0 %v539
    %843 = vmatpush1.xpose.msra.mxu0 %v180
    %844 = vmatprep.mubr.f32.mxu0 %v347
    %845 = vmatmul.mubr.f32.gmra.mrb[0].mxu0 %v299
    %v846 = vpop.f32.mrb[0].mxu0
    %v847 = vadd.f32 %v317, %v846
    %v848 = vpop.f32.mrb[0].mxu0
    %v849 = vadd.f32 %v321, %v848
    %850 = vdwg.mxu0
    %851 = vmatprep.subr.mxu0 %v542
    %852 = vmatpush1.xpose.msra.mxu0 %v182
    %853 = vmatprep.subr.mxu0 %v545
    %854 = vmatpush1.xpose.msra.mxu0 %v184
    %855 = vmatprep.subr.mxu0 %v548
    %856 = vmatpush1.xpose.msra.mxu0 %v186
    %857 = vmatprep.subr.mxu0 %v551
    %858 = vmatpush1.xpose.msra.mxu0 %v188
    %859 = vmatprep.subr.mxu0 %v554
    %860 = vmatpush1.xpose.msra.mxu0 %v190
    %861 = vmatprep.subr.mxu0 %v557
    %862 = vmatpush1.xpose.msra.mxu0 %v192
    %863 = vmatprep.subr.mxu0 %v560
    %864 = vmatpush1.xpose.msra.mxu0 %v194
    %865 = vmatprep.subr.mxu0 %v563
    %866 = vmatpush1.xpose.msra.mxu0 %v196
    %867 = vmatprep.subr.mxu0 %v566
    %868 = vmatpush1.xpose.msra.mxu0 %v198
    %869 = vmatprep.subr.mxu0 %v569
    %870 = vmatpush1.xpose.msra.mxu0 %v200
    %871 = vmatprep.subr.mxu0 %v572
    %872 = vmatpush1.xpose.msra.mxu0 %v202
    %873 = vmatprep.subr.mxu0 %v575
    %874 = vmatpush1.xpose.msra.mxu0 %v204
    %875 = vmatprep.subr.mxu0 %v578
    %876 = vmatpush1.xpose.msra.mxu0 %v206
    %877 = vmatprep.subr.mxu0 %v581
    %878 = vmatpush1.xpose.msra.mxu0 %v208
    %879 = vmatprep.subr.mxu0 %v584
    %880 = vmatpush1.xpose.msra.mxu0 %v210
    %881 = vmatprep.subr.mxu0 %v587
    %882 = vmatpush1.xpose.msra.mxu0 %v212
    %883 = vmatprep.subr.mxu0 %v590
    %884 = vmatpush1.xpose.msra.mxu0 %v214
    %885 = vmatprep.subr.mxu0 %v593
    %886 = vmatpush1.xpose.msra.mxu0 %v216
    %887 = vmatprep.subr.mxu0 %v596
    %888 = vmatpush1.xpose.msra.mxu0 %v218
    %889 = vmatprep.subr.mxu0 %v599
    %890 = vmatpush1.xpose.msra.mxu0 %v220
    %891 = vmatprep.subr.mxu0 %v602
    %892 = vmatpush1.xpose.msra.mxu0 %v222
    %893 = vmatprep.subr.mxu0 %v605
    %894 = vmatpush1.xpose.msra.mxu0 %v224
    %895 = vmatprep.subr.mxu0 %v608
    %896 = vmatpush1.xpose.msra.mxu0 %v226
    %897 = vmatprep.subr.mxu0 %v611
    %898 = vmatpush1.xpose.msra.mxu0 %v228
    %899 = vmatprep.subr.mxu0 %v614
    %900 = vmatpush1.xpose.msra.mxu0 %v230
    %901 = vmatprep.subr.mxu0 %v617
    %902 = vmatpush1.xpose.msra.mxu0 %v232
    %903 = vmatprep.subr.mxu0 %v620
    %904 = vmatpush1.xpose.msra.mxu0 %v234
    %905 = vmatprep.subr.mxu0 %v623
    %906 = vmatpush1.xpose.msra.mxu0 %v236
    %907 = vmatprep.subr.mxu0 %v626
    %908 = vmatpush1.xpose.msra.mxu0 %v238
    %909 = vmatprep.subr.mxu0 %v629
    %910 = vmatpush1.xpose.msra.mxu0 %v240
    %911 = vmatprep.subr.mxu0 %v632
    %912 = vmatpush1.xpose.msra.mxu0 %v242
    %913 = vmatprep.subr.mxu0 %v635
    %914 = vmatpush1.xpose.msra.mxu0 %v244
    %915 = vmatprep.mubr.f32.mxu0 %v347
    %916 = vmatmul.mubr.f32.gmra.mrb[0].mxu0 %v299
    %v917 = vpop.f32.mrb[0].mxu0
    %v918 = vadd.f32 %v325, %v917
    %v919 = vpop.f32.mrb[0].mxu0
    %v920 = vadd.f32 %v329, %v919
    %921 = vdwg.mxu0
    %922 = vmatprep.subr.mxu0 %v638
    %923 = vmatpush1.xpose.msra.mxu0 %v246
    %924 = vmatprep.subr.mxu0 %v641
    %925 = vmatpush1.xpose.msra.mxu0 %v248
    %926 = vmatprep.subr.mxu0 %v644
    %927 = vmatpush1.xpose.msra.mxu0 %v250
    %928 = vmatprep.subr.mxu0 %v647
    %929 = vmatpush1.xpose.msra.mxu0 %v252
    %930 = vmatprep.subr.mxu0 %v650
    %931 = vmatpush1.xpose.msra.mxu0 %v254
    %932 = vmatprep.subr.mxu0 %v653
    %933 = vmatpush1.xpose.msra.mxu0 %v256
    %934 = vmatprep.subr.mxu0 %v656
    %935 = vmatpush1.xpose.msra.mxu0 %v258
    %936 = vmatprep.subr.mxu0 %v659
    %937 = vmatpush1.xpose.msra.mxu0 %v260
    %938 = vmatprep.subr.mxu0 %v662
    %939 = vmatpush1.xpose.msra.mxu0 %v262
    %940 = vmatprep.subr.mxu0 %v665
    %941 = vmatpush1.xpose.msra.mxu0 %v264
    %942 = vmatprep.subr.mxu0 %v668
    %943 = vmatpush1.xpose.msra.mxu0 %v266
    %944 = vmatprep.subr.mxu0 %v671
    %945 = vmatpush1.xpose.msra.mxu0 %v268
    %946 = vmatprep.subr.mxu0 %v674
    %947 = vmatpush1.xpose.msra.mxu0 %v270
    %948 = vmatprep.subr.mxu0 %v677
    %949 = vmatpush1.xpose.msra.mxu0 %v272
    %950 = vmatprep.subr.mxu0 %v680
    %951 = vmatpush1.xpose.msra.mxu0 %v274
    %952 = vmatprep.subr.mxu0 %v683
    %953 = vmatpush1.xpose.msra.mxu0 %v276
    %954 = vmatprep.subr.mxu0 %v686
    %955 = vmatpush1.xpose.msra.mxu0 %v278
    %956 = vmatprep.subr.mxu0 %v689
    %957 = vmatpush1.xpose.msra.mxu0 %v280
    %958 = vmatprep.subr.mxu0 %v692
    %959 = vmatpush1.xpose.msra.mxu0 %v282
    %960 = vmatprep.subr.mxu0 %v695
    %961 = vmatpush1.xpose.msra.mxu0 %v284
    %962 = vmatprep.subr.mxu0 %v698
    %963 = vmatpush1.xpose.msra.mxu0 %v286
    %964 = vmatprep.subr.mxu0 %v701
    %965 = vmatpush1.xpose.msra.mxu0 %v288
    %966 = vmatprep.subr.mxu0 %v704
    %967 = vmatpush1.xpose.msra.mxu0 %v290
    %968 = vmatprep.subr.mxu0 %v707
    %969 = vmatpush1.xpose.msra.mxu0 %v292
    %970 = vmatprep.subr.mxu0 0.0
    %971 = vmatpush1.xpose.msra.mxu0 0.0
    %972 = vmatprep.subr.mxu0 0.0
    %973 = vmatpush1.xpose.msra.mxu0 0.0
    %974 = vmatprep.subr.mxu0 0.0
    %975 = vmatpush1.xpose.msra.mxu0 0.0
    %976 = vmatprep.subr.mxu0 0.0
    %977 = vmatpush1.xpose.msra.mxu0 0.0
    %978 = vmatprep.subr.mxu0 0.0
    %979 = vmatpush1.xpose.msra.mxu0 0.0
    %980 = vmatprep.subr.mxu0 0.0
    %981 = vmatpush1.xpose.msra.mxu0 0.0
    %982 = vmatprep.subr.mxu0 0.0
    %983 = vmatpush1.xpose.msra.mxu0 0.0
    %984 = vmatprep.subr.mxu0 0.0
    %985 = vmatpush1.xpose.msra.mxu0 0.0
    %986 = vmatprep.mubr.f32.mxu0 %v347
    %987 = vmatmul.mubr.f32.gmra.mrb[0].mxu0 %v299
    %v988 = vpop.f32.mrb[0].mxu0
    %v989 = vadd.f32 %v333, %v988
    %v990 = vpop.f32.mrb[0].mxu0
    %v991 = vadd.f32 %v337, %v990
    %992 = vdwg.mxu0
    %v1001 = vcombine.low %v776, %v778
    %v1002 = vcombine.low %v847, %v849
    %v1003 = vcombine.low %v918, %v920
    %v1004 = vcombine.low %v989, %v991
    %v1006 = vunpack.c.l.s4 1966171168
    %v1007 = vunpack.c.0.s8 %v1006
    %v1008 = vlaneseq
    %v1009 = vshrl.u32 %v1008, 7
    %v1010 = vsub.s32 %v1007, %v1009
    %v1011 = vrot.slane %v1001, %v1010
    %v1013 = vunpack.c.l.s4 1966171168
    %v1014 = vunpack.c.0.s8 %v1013
    %v1015 = vlaneseq
    %v1016 = vshrl.u32 %v1015, 7
    %v1017 = vsub.s32 %v1014, %v1016
    %v1018 = vrot.slane %v1002, %v1017
    %v1020 = vunpack.c.l.s4 1966171168
    %v1021 = vunpack.c.0.s8 %v1020
    %v1022 = vlaneseq
    %v1023 = vshrl.u32 %v1022, 7
    %v1024 = vsub.s32 %v1021, %v1023
    %v1025 = vrot.slane %v1003, %v1024
    %v1027 = vunpack.c.l.s4 1966171168
    %v1028 = vunpack.c.0.s8 %v1027
    %v1029 = vlaneseq
    %v1030 = vshrl.u32 %v1029, 7
    %v1031 = vsub.s32 %v1028, %v1030
    %v1032 = vrot.slane %v1004, %v1031
    %v1033 = vcombine.low %v1011, %v1018
    %v1034 = vcombine.low %v1025, %v1032
    %v1036 = vunpack.c.l.s4 1966171168
    %v1037 = vunpack.c.0.s8 %v1036
    %v1038 = vlaneseq
    %v1039 = vshrl.u32 %v1038, 7
    %v1040 = vsub.s32 %v1037, %v1039
    %v1041 = vrot.slane %v1033, %v1040
    %v1043 = vunpack.c.l.s4 1966171168
    %v1044 = vunpack.c.0.s8 %v1043
    %v1045 = vlaneseq
    %v1046 = vshrl.u32 %v1045, 7
    %v1047 = vsub.s32 %v1044, %v1046
    %v1048 = vrot.slane %v1034, %v1047
    %v1049 = vcombine.low %v1041, %v1048
    %v1051 = vlaneseq
    %vm1052 = vcmp.ge.s32.totalorder %v1051, 0
    %vm1053 = vcmp.lt.s32.totalorder %v1051, 960
    %vm1054 = vmand %vm1052, %vm1053
    %1055 = vst.msk [vmem:[#allocation8] sm:$0xff] %vm1054, %v1049
    // Predicated region
    $region26: #{tpu_custom_call.1} parent=1 // pred_check
      _
    $region27: #{tpu_custom_call.1} parent=1 // pred_check_branch
      %1057 = sbr.rel (0) target = $region29
    $region28: #{tpu_custom_call.1} parent=1 // pred_region
      %s1059 = ssub.s32 128, 128
      %1060 = vsyncadd [#allocation4], %s1059
      %s1062 = sshll.u32 [#allocation8], 4
      %s1063 = int_to_ptr.vmem [resolvable:$true] %s1062
      %1065 = dma.vmem_to_hbm [thread:$0]  %s1063, 128, %s3, [#allocation4]
    $region29: #{tpu_custom_call.1} parent=1 // pred_fallthru
      _
    // Predicated region
    $region30: #{tpu_custom_call.1} parent=1 // pred_check
      _
    $region31: #{tpu_custom_call.1} parent=1 // pred_check_branch
      %1067 = sbr.rel (0) target = $region33
    $region32: #{tpu_custom_call.1} parent=1 // pred_region
      %1068 = dma.done [#allocation4], 128
    $region33: #{tpu_custom_call.1} parent=1 // pred_fallthru
      _
    %1069 = vsyncpa [#allocation3], 1
    %1070 = vsyncpa [#allocation6], 1
    %1071 = vsyncpa [#allocation4], 1

</llo_original>
